<compile_context>
chip_gen: v6e
topology: v6e:2x2x1
jax: 0.10.0
libtpu: 0.0.40
codegen_flags: <defaults>
</compile_context>

<pallas_src>
import jax
import jax.numpy as jnp
from jax.experimental import pallas as pl
from jax.experimental.pallas import tpu as pltpu

NUM_STEPS = 10
NEG_SLOPE = 0.1
LANES = 128
MAX_TILE_R = 1024  # in: 1024x128x4B (0.5 MiB) + out: 10x1024x128x4B (5 MiB) -> ~11 MiB dbl-buffered


def _round_up(n, m):
    return ((n + m - 1) // m) * m


def _ode_kernel(w_ref, b_ref, a_pos_ref, a_neg_ref, x_ref, out_ref):
    # w_ref, b_ref, a_pos_ref, a_neg_ref: SMEM (NUM_STEPS,) f32 scalars
    # x_ref:   VMEM (TILE_R, 128) f32 — lane-dense row tile of the batch
    # out_ref: VMEM (NUM_STEPS, TILE_R, 128) f32 — one contiguous slab per step
    cur = x_ref[...]
    for i in range(NUM_STEPS):
        z = cur * w_ref[i] + b_ref[i]                          # Linear(1,1): y = x*W + b
        scale = jnp.where(z >= 0, a_pos_ref[i], a_neg_ref[i])  # alpha * LeakyReLU(0.1) slope
        cur = cur + z * scale                                  # residual + intweight scaling
        out_ref[i] = cur


def classifier_ode_model(x, w, b, alpha):
    """x: any shape whose flattened-per-sample size is 1 (e.g. (B,1,1,1) or (B,1)).
    w, b, alpha: (10,) float32 parameter vectors (fc_i.weight, fc_i.bias, a_i.alpha).
    Returns tuple (x1, ..., x10), each of shape (B, 1) float32."""
    B = x.shape[0]
    flat = x.reshape(B, -1).astype(jnp.float32)
    assert flat.shape[1] == 1, "ClassifierODEmodel expects 1 feature per sample"
    flat = flat.reshape(-1)

    # Lane-dense relayout: batch spread over (rows, 128); rows padded to a
    # multiple of the sublane tile (8) and of the row tile.
    rows = _round_up(max(pl.cdiv(B, LANES), 1), 8)
    tile_r = min(MAX_TILE_R, rows)
    rows = _round_up(rows, tile_r)
    b_pad = rows * LANES

    x_padded = jnp.pad(flat, (0, b_pad - B)).reshape(rows, LANES)

    w32 = w.astype(jnp.float32)
    b32 = b.astype(jnp.float32)
    a_pos = alpha.astype(jnp.float32)
    a_neg = (jnp.float32(NEG_SLOPE) * alpha).astype(jnp.float32)

    smem_spec = pl.BlockSpec(memory_space=pltpu.SMEM)
    grid = (rows // tile_r,)

    slab = pl.pallas_call(
        _ode_kernel,
        out_shape=jax.ShapeDtypeStruct((NUM_STEPS, rows, LANES), jnp.float32),
        grid=grid,
        in_specs=[smem_spec, smem_spec, smem_spec, smem_spec,
                  pl.BlockSpec((tile_r, LANES), lambda i: (i, 0))],
        out_specs=pl.BlockSpec((NUM_STEPS, tile_r, LANES), lambda i: (0, i, 0)),
        compiler_params=pltpu.CompilerParams(
            dimension_semantics=("parallel",)),
    )(w32, b32, a_pos, a_neg, x_padded)

    # Split back into 10 (B, 1) outputs — contiguous slices, pure layout plumbing.
    flat_steps = slab.reshape(NUM_STEPS, rows * LANES)[:, :B]
    return tuple(flat_steps[i].reshape(B, 1) for i in range(NUM_STEPS))


def _reference(x, w, b, alpha):
    # Mirrors the PyTorch forward exactly (same op order as the nn.Module).
    B = x.shape[0]
    cur = x.reshape(B, -1).astype(jnp.float32)
    outs = []
    for i in range(NUM_STEPS):
        z = cur * w[i] + b[i]
        act = jnp.where(z >= 0, z, NEG_SLOPE * z)
        cur = cur + alpha[i] * act
        outs.append(cur)
    return tuple(outs)


if __name__ == "__main__":
    key = jax.random.PRNGKey(0)
    kx, kw, kb, kx2 = jax.random.split(key, 4)

    # Deterministic parameters mimicking nn.Linear(1,1): uniform(-1, 1) (fan_in=1).
    # Alpha initialized to 0.1 as in intweight().
    w = jax.random.uniform(kw, (NUM_STEPS,), minval=-1.0, maxval=1.0, dtype=jnp.float32)
    b = jax.random.uniform(kb, (NUM_STEPS,), minval=-1.0, maxval=1.0, dtype=jnp.float32)
    alpha = jnp.full((NUM_STEPS,), 0.1, dtype=jnp.float32)

    ok = True

    # Case 1: NCHW-style input with C=H=W=1 so that view(B, -1) gives (B, 1).
    B1 = 8
    x1 = jax.random.normal(kx, (B1, 1, 1, 1), dtype=jnp.float32)
    outs1 = jax.block_until_ready(classifier_ode_model(x1, w, b, alpha))
    refs1 = _reference(x1, w, b, alpha)
    for o, r in zip(outs1, refs1):
        assert o.shape == (B1, 1)
        ok = ok and bool(jnp.allclose(o, r, atol=1e-5, rtol=1e-5))

    # Case 2: a batch that is not a multiple of 128 (exercises pad + slice path).
    B2 = 300
    x2 = jax.random.normal(kx2, (B2, 1), dtype=jnp.float32)
    outs2 = jax.block_until_ready(classifier_ode_model(x2, w, b, alpha))
    refs2 = _reference(x2, w, b, alpha)
    for o, r in zip(outs2, refs2):
        assert o.shape == (B2, 1)
        ok = ok and bool(jnp.allclose(o, r, atol=1e-5, rtol=1e-5))

    assert ok, "Pallas kernel output mismatch vs reference"
    print("KERNEL_OK")
</pallas_src>

<mosaic_0001>
module attributes {stable_mosaic.version = 11 : i64} {
  func.func @_ode_kernel(%arg0: i32, %arg1: memref<10xf32, #tpu.memory_space<smem>>, %arg2: memref<10xf32, #tpu.memory_space<smem>>, %arg3: memref<10xf32, #tpu.memory_space<smem>>, %arg4: memref<10xf32, #tpu.memory_space<smem>>, %arg5: memref<8x128xf32, #tpu.memory_space<vmem>>, %arg6: memref<10x8x128xf32, #tpu.memory_space<vmem>>) attributes {dimension_semantics = [#tpu.dimension_semantics<parallel>], iteration_bounds = array<i64: 1>, scalar_prefetch = 0 : i64, scratch_operands = 0 : i64, tpu.core_type = #tpu.core_type<tc>, window_params = [{transform_indices = @transform_0, window_bounds = array<i64: 10>}, {transform_indices = @transform_1, window_bounds = array<i64: 10>}, {transform_indices = @transform_2, window_bounds = array<i64: 10>}, {transform_indices = @transform_3, window_bounds = array<i64: 10>}, {transform_indices = @transform_4, window_bounds = array<i64: 8, 128>}, {transform_indices = @transform_5, window_bounds = array<i64: 10, 8, 128>}]} {
    %c0 = arith.constant 0 : index
    %c0_0 = arith.constant 0 : index
    %0 = vector.load %arg5[%c0, %c0_0] : memref<8x128xf32, #tpu.memory_space<vmem>>, vector<8x128xf32>
    %c0_1 = arith.constant 0 : index
    %1 = memref.load %arg1[%c0_1] : memref<10xf32, #tpu.memory_space<smem>>
    %2 = vector.broadcast %1 : f32 to vector<8x128xf32>
    %3 = arith.mulf %0, %2 : vector<8x128xf32>
    %c0_2 = arith.constant 0 : index
    %4 = memref.load %arg2[%c0_2] : memref<10xf32, #tpu.memory_space<smem>>
    %5 = vector.broadcast %4 : f32 to vector<8x128xf32>
    %6 = arith.addf %3, %5 : vector<8x128xf32>
    %cst = arith.constant 0.000000e+00 : f32
    %7 = vector.broadcast %cst : f32 to vector<8x128xf32>
    %8 = arith.cmpf oge, %6, %7 : vector<8x128xf32>
    %c0_3 = arith.constant 0 : index
    %9 = memref.load %arg3[%c0_3] : memref<10xf32, #tpu.memory_space<smem>>
    %c0_4 = arith.constant 0 : index
    %10 = memref.load %arg4[%c0_4] : memref<10xf32, #tpu.memory_space<smem>>
    %11 = vector.broadcast %9 : f32 to vector<8x128xf32>
    %12 = vector.broadcast %10 : f32 to vector<8x128xf32>
    %13 = arith.select %8, %11, %12 : vector<8x128xi1>, vector<8x128xf32>
    %14 = arith.mulf %6, %13 : vector<8x128xf32>
    %15 = arith.addf %0, %14 : vector<8x128xf32>
    %c0_5 = arith.constant 0 : index
    %c0_6 = arith.constant 0 : index
    %c0_7 = arith.constant 0 : index
    %16 = vector.load %arg6[%c0_5, %c0_6, %c0_7] : memref<10x8x128xf32, #tpu.memory_space<vmem>>, vector<1x8x128xf32>
    %17 = vector.shape_cast %16 : vector<1x8x128xf32> to vector<8x128xf32>
    %18 = vector.shape_cast %15 : vector<8x128xf32> to vector<1x8x128xf32>
    tpu.vector_store %arg6[%c0_5, %c0_6, %c0_7], %18 {strides = array<i32>} : memref<10x8x128xf32, #tpu.memory_space<vmem>>, vector<1x8x128xf32>,
    %c1 = arith.constant 1 : index
    %19 = memref.load %arg1[%c1] : memref<10xf32, #tpu.memory_space<smem>>
    %20 = vector.broadcast %19 : f32 to vector<8x128xf32>
    %21 = arith.mulf %15, %20 : vector<8x128xf32>
    %c1_8 = arith.constant 1 : index
    %22 = memref.load %arg2[%c1_8] : memref<10xf32, #tpu.memory_space<smem>>
    %23 = vector.broadcast %22 : f32 to vector<8x128xf32>
    %24 = arith.addf %21, %23 : vector<8x128xf32>
    %cst_9 = arith.constant 0.000000e+00 : f32
    %25 = vector.broadcast %cst_9 : f32 to vector<8x128xf32>
    %26 = arith.cmpf oge, %24, %25 : vector<8x128xf32>
    %c1_10 = arith.constant 1 : index
    %27 = memref.load %arg3[%c1_10] : memref<10xf32, #tpu.memory_space<smem>>
    %c1_11 = arith.constant 1 : index
    %28 = memref.load %arg4[%c1_11] : memref<10xf32, #tpu.memory_space<smem>>
    %29 = vector.broadcast %27 : f32 to vector<8x128xf32>
    %30 = vector.broadcast %28 : f32 to vector<8x128xf32>
    %31 = arith.select %26, %29, %30 : vector<8x128xi1>, vector<8x128xf32>
    %32 = arith.mulf %24, %31 : vector<8x128xf32>
    %33 = arith.addf %15, %32 : vector<8x128xf32>
    %c1_12 = arith.constant 1 : index
    %c0_13 = arith.constant 0 : index
    %c0_14 = arith.constant 0 : index
    %34 = vector.load %arg6[%c1_12, %c0_13, %c0_14] : memref<10x8x128xf32, #tpu.memory_space<vmem>>, vector<1x8x128xf32>
    %35 = vector.shape_cast %34 : vector<1x8x128xf32> to vector<8x128xf32>
    %36 = vector.shape_cast %33 : vector<8x128xf32> to vector<1x8x128xf32>
    tpu.vector_store %arg6[%c1_12, %c0_13, %c0_14], %36 {strides = array<i32>} : memref<10x8x128xf32, #tpu.memory_space<vmem>>, vector<1x8x128xf32>,
    %c2 = arith.constant 2 : index
    %37 = memref.load %arg1[%c2] : memref<10xf32, #tpu.memory_space<smem>>
    %38 = vector.broadcast %37 : f32 to vector<8x128xf32>
    %39 = arith.mulf %33, %38 : vector<8x128xf32>
    %c2_15 = arith.constant 2 : index
    %40 = memref.load %arg2[%c2_15] : memref<10xf32, #tpu.memory_space<smem>>
    %41 = vector.broadcast %40 : f32 to vector<8x128xf32>
    %42 = arith.addf %39, %41 : vector<8x128xf32>
    %cst_16 = arith.constant 0.000000e+00 : f32
    %43 = vector.broadcast %cst_16 : f32 to vector<8x128xf32>
    %44 = arith.cmpf oge, %42, %43 : vector<8x128xf32>
    %c2_17 = arith.constant 2 : index
    %45 = memref.load %arg3[%c2_17] : memref<10xf32, #tpu.memory_space<smem>>
    %c2_18 = arith.constant 2 : index
    %46 = memref.load %arg4[%c2_18] : memref<10xf32, #tpu.memory_space<smem>>
    %47 = vector.broadcast %45 : f32 to vector<8x128xf32>
    %48 = vector.broadcast %46 : f32 to vector<8x128xf32>
    %49 = arith.select %44, %47, %48 : vector<8x128xi1>, vector<8x128xf32>
    %50 = arith.mulf %42, %49 : vector<8x128xf32>
    %51 = arith.addf %33, %50 : vector<8x128xf32>
    %c2_19 = arith.constant 2 : index
    %c0_20 = arith.constant 0 : index
    %c0_21 = arith.constant 0 : index
    %52 = vector.load %arg6[%c2_19, %c0_20, %c0_21] : memref<10x8x128xf32, #tpu.memory_space<vmem>>, vector<1x8x128xf32>
    %53 = vector.shape_cast %52 : vector<1x8x128xf32> to vector<8x128xf32>
    %54 = vector.shape_cast %51 : vector<8x128xf32> to vector<1x8x128xf32>
    tpu.vector_store %arg6[%c2_19, %c0_20, %c0_21], %54 {strides = array<i32>} : memref<10x8x128xf32, #tpu.memory_space<vmem>>, vector<1x8x128xf32>,
    %c3 = arith.constant 3 : index
    %55 = memref.load %arg1[%c3] : memref<10xf32, #tpu.memory_space<smem>>
    %56 = vector.broadcast %55 : f32 to vector<8x128xf32>
    %57 = arith.mulf %51, %56 : vector<8x128xf32>
    %c3_22 = arith.constant 3 : index
    %58 = memref.load %arg2[%c3_22] : memref<10xf32, #tpu.memory_space<smem>>
    %59 = vector.broadcast %58 : f32 to vector<8x128xf32>
    %60 = arith.addf %57, %59 : vector<8x128xf32>
    %cst_23 = arith.constant 0.000000e+00 : f32
    %61 = vector.broadcast %cst_23 : f32 to vector<8x128xf32>
    %62 = arith.cmpf oge, %60, %61 : vector<8x128xf32>
    %c3_24 = arith.constant 3 : index
    %63 = memref.load %arg3[%c3_24] : memref<10xf32, #tpu.memory_space<smem>>
    %c3_25 = arith.constant 3 : index
    %64 = memref.load %arg4[%c3_25] : memref<10xf32, #tpu.memory_space<smem>>
    %65 = vector.broadcast %63 : f32 to vector<8x128xf32>
    %66 = vector.broadcast %64 : f32 to vector<8x128xf32>
    %67 = arith.select %62, %65, %66 : vector<8x128xi1>, vector<8x128xf32>
    %68 = arith.mulf %60, %67 : vector<8x128xf32>
    %69 = arith.addf %51, %68 : vector<8x128xf32>
    %c3_26 = arith.constant 3 : index
    %c0_27 = arith.constant 0 : index
    %c0_28 = arith.constant 0 : index
    %70 = vector.load %arg6[%c3_26, %c0_27, %c0_28] : memref<10x8x128xf32, #tpu.memory_space<vmem>>, vector<1x8x128xf32>
    %71 = vector.shape_cast %70 : vector<1x8x128xf32> to vector<8x128xf32>
    %72 = vector.shape_cast %69 : vector<8x128xf32> to vector<1x8x128xf32>
    tpu.vector_store %arg6[%c3_26, %c0_27, %c0_28], %72 {strides = array<i32>} : memref<10x8x128xf32, #tpu.memory_space<vmem>>, vector<1x8x128xf32>,
    %c4 = arith.constant 4 : index
    %73 = memref.load %arg1[%c4] : memref<10xf32, #tpu.memory_space<smem>>
    %74 = vector.broadcast %73 : f32 to vector<8x128xf32>
    %75 = arith.mulf %69, %74 : vector<8x128xf32>
    %c4_29 = arith.constant 4 : index
    %76 = memref.load %arg2[%c4_29] : memref<10xf32, #tpu.memory_space<smem>>
    %77 = vector.broadcast %76 : f32 to vector<8x128xf32>
    %78 = arith.addf %75, %77 : vector<8x128xf32>
    %cst_30 = arith.constant 0.000000e+00 : f32
    %79 = vector.broadcast %cst_30 : f32 to vector<8x128xf32>
    %80 = arith.cmpf oge, %78, %79 : vector<8x128xf32>
    %c4_31 = arith.constant 4 : index
    %81 = memref.load %arg3[%c4_31] : memref<10xf32, #tpu.memory_space<smem>>
    %c4_32 = arith.constant 4 : index
    %82 = memref.load %arg4[%c4_32] : memref<10xf32, #tpu.memory_space<smem>>
    %83 = vector.broadcast %81 : f32 to vector<8x128xf32>
    %84 = vector.broadcast %82 : f32 to vector<8x128xf32>
    %85 = arith.select %80, %83, %84 : vector<8x128xi1>, vector<8x128xf32>
    %86 = arith.mulf %78, %85 : vector<8x128xf32>
    %87 = arith.addf %69, %86 : vector<8x128xf32>
    %c4_33 = arith.constant 4 : index
    %c0_34 = arith.constant 0 : index
    %c0_35 = arith.constant 0 : index
    %88 = vector.load %arg6[%c4_33, %c0_34, %c0_35] : memref<10x8x128xf32, #tpu.memory_space<vmem>>, vector<1x8x128xf32>
    %89 = vector.shape_cast %88 : vector<1x8x128xf32> to vector<8x128xf32>
    %90 = vector.shape_cast %87 : vector<8x128xf32> to vector<1x8x128xf32>
    tpu.vector_store %arg6[%c4_33, %c0_34, %c0_35], %90 {strides = array<i32>} : memref<10x8x128xf32, #tpu.memory_space<vmem>>, vector<1x8x128xf32>,
    %c5 = arith.constant 5 : index
    %91 = memref.load %arg1[%c5] : memref<10xf32, #tpu.memory_space<smem>>
    %92 = vector.broadcast %91 : f32 to vector<8x128xf32>
    %93 = arith.mulf %87, %92 : vector<8x128xf32>
    %c5_36 = arith.constant 5 : index
    %94 = memref.load %arg2[%c5_36] : memref<10xf32, #tpu.memory_space<smem>>
    %95 = vector.broadcast %94 : f32 to vector<8x128xf32>
    %96 = arith.addf %93, %95 : vector<8x128xf32>
    %cst_37 = arith.constant 0.000000e+00 : f32
    %97 = vector.broadcast %cst_37 : f32 to vector<8x128xf32>
    %98 = arith.cmpf oge, %96, %97 : vector<8x128xf32>
    %c5_38 = arith.constant 5 : index
    %99 = memref.load %arg3[%c5_38] : memref<10xf32, #tpu.memory_space<smem>>
    %c5_39 = arith.constant 5 : index
    %100 = memref.load %arg4[%c5_39] : memref<10xf32, #tpu.memory_space<smem>>
    %101 = vector.broadcast %99 : f32 to vector<8x128xf32>
    %102 = vector.broadcast %100 : f32 to vector<8x128xf32>
    %103 = arith.select %98, %101, %102 : vector<8x128xi1>, vector<8x128xf32>
    %104 = arith.mulf %96, %103 : vector<8x128xf32>
    %105 = arith.addf %87, %104 : vector<8x128xf32>
    %c5_40 = arith.constant 5 : index
    %c0_41 = arith.constant 0 : index
    %c0_42 = arith.constant 0 : index
    %106 = vector.load %arg6[%c5_40, %c0_41, %c0_42] : memref<10x8x128xf32, #tpu.memory_space<vmem>>, vector<1x8x128xf32>
    %107 = vector.shape_cast %106 : vector<1x8x128xf32> to vector<8x128xf32>
    %108 = vector.shape_cast %105 : vector<8x128xf32> to vector<1x8x128xf32>
    tpu.vector_store %arg6[%c5_40, %c0_41, %c0_42], %108 {strides = array<i32>} : memref<10x8x128xf32, #tpu.memory_space<vmem>>, vector<1x8x128xf32>,
    %c6 = arith.constant 6 : index
    %109 = memref.load %arg1[%c6] : memref<10xf32, #tpu.memory_space<smem>>
    %110 = vector.broadcast %109 : f32 to vector<8x128xf32>
    %111 = arith.mulf %105, %110 : vector<8x128xf32>
    %c6_43 = arith.constant 6 : index
    %112 = memref.load %arg2[%c6_43] : memref<10xf32, #tpu.memory_space<smem>>
    %113 = vector.broadcast %112 : f32 to vector<8x128xf32>
    %114 = arith.addf %111, %113 : vector<8x128xf32>
    %cst_44 = arith.constant 0.000000e+00 : f32
    %115 = vector.broadcast %cst_44 : f32 to vector<8x128xf32>
    %116 = arith.cmpf oge, %114, %115 : vector<8x128xf32>
    %c6_45 = arith.constant 6 : index
    %117 = memref.load %arg3[%c6_45] : memref<10xf32, #tpu.memory_space<smem>>
    %c6_46 = arith.constant 6 : index
    %118 = memref.load %arg4[%c6_46] : memref<10xf32, #tpu.memory_space<smem>>
    %119 = vector.broadcast %117 : f32 to vector<8x128xf32>
    %120 = vector.broadcast %118 : f32 to vector<8x128xf32>
    %121 = arith.select %116, %119, %120 : vector<8x128xi1>, vector<8x128xf32>
    %122 = arith.mulf %114, %121 : vector<8x128xf32>
    %123 = arith.addf %105, %122 : vector<8x128xf32>
    %c6_47 = arith.constant 6 : index
    %c0_48 = arith.constant 0 : index
    %c0_49 = arith.constant 0 : index
    %124 = vector.load %arg6[%c6_47, %c0_48, %c0_49] : memref<10x8x128xf32, #tpu.memory_space<vmem>>, vector<1x8x128xf32>
    %125 = vector.shape_cast %124 : vector<1x8x128xf32> to vector<8x128xf32>
    %126 = vector.shape_cast %123 : vector<8x128xf32> to vector<1x8x128xf32>
    tpu.vector_store %arg6[%c6_47, %c0_48, %c0_49], %126 {strides = array<i32>} : memref<10x8x128xf32, #tpu.memory_space<vmem>>, vector<1x8x128xf32>,
    %c7 = arith.constant 7 : index
    %127 = memref.load %arg1[%c7] : memref<10xf32, #tpu.memory_space<smem>>
    %128 = vector.broadcast %127 : f32 to vector<8x128xf32>
    %129 = arith.mulf %123, %128 : vector<8x128xf32>
    %c7_50 = arith.constant 7 : index
    %130 = memref.load %arg2[%c7_50] : memref<10xf32, #tpu.memory_space<smem>>
    %131 = vector.broadcast %130 : f32 to vector<8x128xf32>
    %132 = arith.addf %129, %131 : vector<8x128xf32>
    %cst_51 = arith.constant 0.000000e+00 : f32
    %133 = vector.broadcast %cst_51 : f32 to vector<8x128xf32>
    %134 = arith.cmpf oge, %132, %133 : vector<8x128xf32>
    %c7_52 = arith.constant 7 : index
    %135 = memref.load %arg3[%c7_52] : memref<10xf32, #tpu.memory_space<smem>>
    %c7_53 = arith.constant 7 : index
    %136 = memref.load %arg4[%c7_53] : memref<10xf32, #tpu.memory_space<smem>>
    %137 = vector.broadcast %135 : f32 to vector<8x128xf32>
    %138 = vector.broadcast %136 : f32 to vector<8x128xf32>
    %139 = arith.select %134, %137, %138 : vector<8x128xi1>, vector<8x128xf32>
    %140 = arith.mulf %132, %139 : vector<8x128xf32>
    %141 = arith.addf %123, %140 : vector<8x128xf32>
    %c7_54 = arith.constant 7 : index
    %c0_55 = arith.constant 0 : index
    %c0_56 = arith.constant 0 : index
    %142 = vector.load %arg6[%c7_54, %c0_55, %c0_56] : memref<10x8x128xf32, #tpu.memory_space<vmem>>, vector<1x8x128xf32>
    %143 = vector.shape_cast %142 : vector<1x8x128xf32> to vector<8x128xf32>
    %144 = vector.shape_cast %141 : vector<8x128xf32> to vector<1x8x128xf32>
    tpu.vector_store %arg6[%c7_54, %c0_55, %c0_56], %144 {strides = array<i32>} : memref<10x8x128xf32, #tpu.memory_space<vmem>>, vector<1x8x128xf32>,
    %c8 = arith.constant 8 : index
    %145 = memref.load %arg1[%c8] : memref<10xf32, #tpu.memory_space<smem>>
    %146 = vector.broadcast %145 : f32 to vector<8x128xf32>
    %147 = arith.mulf %141, %146 : vector<8x128xf32>
    %c8_57 = arith.constant 8 : index
    %148 = memref.load %arg2[%c8_57] : memref<10xf32, #tpu.memory_space<smem>>
    %149 = vector.broadcast %148 : f32 to vector<8x128xf32>
    %150 = arith.addf %147, %149 : vector<8x128xf32>
    %cst_58 = arith.constant 0.000000e+00 : f32
    %151 = vector.broadcast %cst_58 : f32 to vector<8x128xf32>
    %152 = arith.cmpf oge, %150, %151 : vector<8x128xf32>
    %c8_59 = arith.constant 8 : index
    %153 = memref.load %arg3[%c8_59] : memref<10xf32, #tpu.memory_space<smem>>
    %c8_60 = arith.constant 8 : index
    %154 = memref.load %arg4[%c8_60] : memref<10xf32, #tpu.memory_space<smem>>
    %155 = vector.broadcast %153 : f32 to vector<8x128xf32>
    %156 = vector.broadcast %154 : f32 to vector<8x128xf32>
    %157 = arith.select %152, %155, %156 : vector<8x128xi1>, vector<8x128xf32>
    %158 = arith.mulf %150, %157 : vector<8x128xf32>
    %159 = arith.addf %141, %158 : vector<8x128xf32>
    %c8_61 = arith.constant 8 : index
    %c0_62 = arith.constant 0 : index
    %c0_63 = arith.constant 0 : index
    %160 = vector.load %arg6[%c8_61, %c0_62, %c0_63] : memref<10x8x128xf32, #tpu.memory_space<vmem>>, vector<1x8x128xf32>
    %161 = vector.shape_cast %160 : vector<1x8x128xf32> to vector<8x128xf32>
    %162 = vector.shape_cast %159 : vector<8x128xf32> to vector<1x8x128xf32>
    tpu.vector_store %arg6[%c8_61, %c0_62, %c0_63], %162 {strides = array<i32>} : memref<10x8x128xf32, #tpu.memory_space<vmem>>, vector<1x8x128xf32>,
    %c9 = arith.constant 9 : index
    %163 = memref.load %arg1[%c9] : memref<10xf32, #tpu.memory_space<smem>>
    %164 = vector.broadcast %163 : f32 to vector<8x128xf32>
    %165 = arith.mulf %159, %164 : vector<8x128xf32>
    %c9_64 = arith.constant 9 : index
    %166 = memref.load %arg2[%c9_64] : memref<10xf32, #tpu.memory_space<smem>>
    %167 = vector.broadcast %166 : f32 to vector<8x128xf32>
    %168 = arith.addf %165, %167 : vector<8x128xf32>
    %cst_65 = arith.constant 0.000000e+00 : f32
    %169 = vector.broadcast %cst_65 : f32 to vector<8x128xf32>
    %170 = arith.cmpf oge, %168, %169 : vector<8x128xf32>
    %c9_66 = arith.constant 9 : index
    %171 = memref.load %arg3[%c9_66] : memref<10xf32, #tpu.memory_space<smem>>
    %c9_67 = arith.constant 9 : index
    %172 = memref.load %arg4[%c9_67] : memref<10xf32, #tpu.memory_space<smem>>
    %173 = vector.broadcast %171 : f32 to vector<8x128xf32>
    %174 = vector.broadcast %172 : f32 to vector<8x128xf32>
    %175 = arith.select %170, %173, %174 : vector<8x128xi1>, vector<8x128xf32>
    %176 = arith.mulf %168, %175 : vector<8x128xf32>
    %177 = arith.addf %159, %176 : vector<8x128xf32>
    %c9_68 = arith.constant 9 : index
    %c0_69 = arith.constant 0 : index
    %c0_70 = arith.constant 0 : index
    %178 = vector.load %arg6[%c9_68, %c0_69, %c0_70] : memref<10x8x128xf32, #tpu.memory_space<vmem>>, vector<1x8x128xf32>
    %179 = vector.shape_cast %178 : vector<1x8x128xf32> to vector<8x128xf32>
    %180 = vector.shape_cast %177 : vector<8x128xf32> to vector<1x8x128xf32>
    tpu.vector_store %arg6[%c9_68, %c0_69, %c0_70], %180 {strides = array<i32>} : memref<10x8x128xf32, #tpu.memory_space<vmem>>, vector<1x8x128xf32>,
    return
  }
  func.func @transform_0(%arg0: i32) -> i32 {
    %c0_i32 = arith.constant 0 : i32
    %c0_i32_0 = arith.constant 0 : i32
    return %c0_i32 : i32
  }
  func.func @transform_1(%arg0: i32) -> i32 {
    %c0_i32 = arith.constant 0 : i32
    %c0_i32_0 = arith.constant 0 : i32
    return %c0_i32 : i32
  }
  func.func @transform_2(%arg0: i32) -> i32 {
    %c0_i32 = arith.constant 0 : i32
    %c0_i32_0 = arith.constant 0 : i32
    return %c0_i32 : i32
  }
  func.func @transform_3(%arg0: i32) -> i32 {
    %c0_i32 = arith.constant 0 : i32
    %c0_i32_0 = arith.constant 0 : i32
    return %c0_i32 : i32
  }
  func.func @transform_4(%arg0: i32) -> (i32, i32) {
    %c0_i32 = arith.constant 0 : i32
    %c0_i32_0 = arith.constant 0 : i32
    return %arg0, %c0_i32 : i32, i32
  }
  func.func @transform_5(%arg0: i32) -> (i32, i32, i32) {
    %c0_i32 = arith.constant 0 : i32
    %c0_i32_0 = arith.constant 0 : i32
    %c0_i32_1 = arith.constant 0 : i32
    return %c0_i32, %arg0, %c0_i32_0 : i32, i32, i32
  }
}

</mosaic_0001>

<llo_original>
// kernel: tpu_custom_call.1
$region0: #{tpu_custom_call.1}
  #allocation0 [shape = 'u32[]', space=smem, size = 0x4, offset = 0x4, fixed_abs, tag = 'smem constant byte address 0x4 - core index']
  #allocation1 [shape = 'u32[144,128]{1,0:T(1,128)}', space=vmem, size = 0x12000, scoped, tag = 'internal scratch']
  %s0 = inlined_call_operand.hbm [shape: f32[10], index: 0, kind: input, shape index: {}]
  %s1 = inlined_call_operand.vmem [shape: f32[10], index: 1, kind: input, shape index: {}]
  %s2 = inlined_call_operand.vmem [shape: f32[10], index: 2, kind: input, shape index: {}]
  %s3 = inlined_call_operand.vmem [shape: f32[10], index: 3, kind: input, shape index: {}]
  %s4 = inlined_call_operand.hbm [shape: f32[8,128], index: 4, kind: input, shape index: {}]
  %s5 = inlined_call_operand.hbm [shape: f32[10,8,128], index: 5, kind: output, shape index: {}]
  %s6 = sld [smem:[#allocation0]]
  $region50: #{tpu_custom_call.1} parent=0
    _
  %s8 = ssub.s32 1, %s6
  %s9 = scalar_select 0, %s8, %s6
  $region1: #{tpu_custom_call.1} parent=0
    #allocation2 [shape = 'u8[512]{0}', space=smem, size = 0x200, scoped, tag = 'input window, operand 0, single buffered']
    #allocation3 [shape = 's32[1]{0}', space=sflag, size = 0x4, scoped, tag = 'scoped memory for tpu_custom_call.1']
    #allocation4 [shape = 's32[1]{0}', space=sflag, size = 0x4, scoped, tag = 'scoped memory for tpu_custom_call.1']
    #allocation5 [shape = 's32[1]{0}', space=sflag, size = 0x4, scoped, tag = 'scoped memory for tpu_custom_call.1']
    #allocation6 [shape = 's32[1]{0}', space=sflag, size = 0x4, scoped, tag = 'scoped memory for tpu_custom_call.1']
    #allocation7 [shape = 'u8[512]{0}', space=smem, size = 0x200, scoped, tag = 'input window, operand 1, single buffered']
    #allocation8 [shape = 'u8[512]{0}', space=smem, size = 0x200, scoped, tag = 'input window, operand 2, single buffered']
    #allocation9 [shape = 's32[1]{0}', space=sflag, size = 0x4, scoped, tag = 'scoped memory for tpu_custom_call.1']
    #allocation10 [shape = 'u8[512]{0}', space=smem, size = 0x200, scoped, tag = 'input window, operand 3, single buffered']
    #allocation11 [shape = 'u8[4096]{0}', space=vmem, size = 0x1000, scoped, tag = 'input window, operand 4, single buffered']
    #allocation12 [shape = 'u8[40960]{0}', space=vmem, size = 0xa000, scoped, tag = 'output window, operand 0, single buffered']
    %10 = vsyncpa [#allocation5], 0
    %11 = vsyncpa [#allocation6], 0
    %12 = vsyncpa [#allocation9], 0
    %13 = vsyncpa [#allocation3], 0
    %14 = vsyncpa [#allocation4], 0
    // Predicated region
    $region2: #{tpu_custom_call.1} parent=1 // pred_check
      _
    $region3: #{tpu_custom_call.1} parent=1 // pred_check_branch
      %16 = sbr.rel (0) target = $region5
    $region4: #{tpu_custom_call.1} parent=1 // pred_region
      %s18 = ssub.s32 16, 16
      %19 = vsyncadd [#allocation5], %s18
      %22 = dma.hbm_to_smem %s0, 16, [#allocation2], [#allocation5]
    $region5: #{tpu_custom_call.1} parent=1 // pred_fallthru
      _
    // Predicated region
    $region6: #{tpu_custom_call.1} parent=1 // pred_check
      _
    $region7: #{tpu_custom_call.1} parent=1 // pred_check_branch
      %24 = sbr.rel (0) target = $region9
    $region8: #{tpu_custom_call.1} parent=1 // pred_region
      %s26 = ssub.s32 16, 16
      %27 = vsyncadd [#allocation6], %s26
      %s29 = sshll.u32 %s1, 4
      %s30 = int_to_ptr.vmem [resolvable:$true] %s29
      %32 = dma.vmem_to_smem %s30, 16, [#allocation7], [#allocation6]
    $region9: #{tpu_custom_call.1} parent=1 // pred_fallthru
      _
    // Predicated region
    $region10: #{tpu_custom_call.1} parent=1 // pred_check
      _
    $region11: #{tpu_custom_call.1} parent=1 // pred_check_branch
      %34 = sbr.rel (0) target = $region13
    $region12: #{tpu_custom_call.1} parent=1 // pred_region
      %s36 = ssub.s32 16, 16
      %37 = vsyncadd [#allocation9], %s36
      %s39 = sshll.u32 %s2, 4
      %s40 = int_to_ptr.vmem [resolvable:$true] %s39
      %42 = dma.vmem_to_smem %s40, 16, [#allocation8], [#allocation9]
    $region13: #{tpu_custom_call.1} parent=1 // pred_fallthru
      _
    // Predicated region
    $region14: #{tpu_custom_call.1} parent=1 // pred_check
      _
    $region15: #{tpu_custom_call.1} parent=1 // pred_check_branch
      %44 = sbr.rel (0) target = $region17
    $region16: #{tpu_custom_call.1} parent=1 // pred_region
      %s46 = ssub.s32 16, 16
      %47 = vsyncadd [#allocation9], %s46
      %s49 = sshll.u32 %s3, 4
      %s50 = int_to_ptr.vmem [resolvable:$true] %s49
      %52 = dma.vmem_to_smem %s50, 16, [#allocation10], [#allocation9]
    $region17: #{tpu_custom_call.1} parent=1 // pred_fallthru
      _
    // Predicated region
    $region18: #{tpu_custom_call.1} parent=1 // pred_check
      _
    $region19: #{tpu_custom_call.1} parent=1 // pred_check_branch
      %54 = sbr.rel (0) target = $region21
    $region20: #{tpu_custom_call.1} parent=1 // pred_region
      %s56 = ssub.s32 128, 128
      %57 = vsyncadd [#allocation3], %s56
      %s59 = sshll.u32 [#allocation11], 4
      %s60 = int_to_ptr.vmem [resolvable:$true] %s59
      %62 = dma.hbm_to_vmem [thread:$0]  %s4, 128, %s60, [#allocation3]
    $region21: #{tpu_custom_call.1} parent=1 // pred_fallthru
      _
    // Predicated region
    $region22: #{tpu_custom_call.1} parent=1 // pred_check
      _
    $region23: #{tpu_custom_call.1} parent=1 // pred_check_branch
      %64 = sbr.rel (0) target = $region25
    $region24: #{tpu_custom_call.1} parent=1 // pred_region
      %65 = dma.done [#allocation5], 16
    $region25: #{tpu_custom_call.1} parent=1 // pred_fallthru
      _
    // Predicated region
    $region26: #{tpu_custom_call.1} parent=1 // pred_check
      _
    $region27: #{tpu_custom_call.1} parent=1 // pred_check_branch
      %67 = sbr.rel (0) target = $region29
    $region28: #{tpu_custom_call.1} parent=1 // pred_region
      %68 = dma.done [#allocation6], 16
    $region29: #{tpu_custom_call.1} parent=1 // pred_fallthru
      _
    // Predicated region
    $region30: #{tpu_custom_call.1} parent=1 // pred_check
      _
    $region31: #{tpu_custom_call.1} parent=1 // pred_check_branch
      %70 = sbr.rel (0) target = $region33
    $region32: #{tpu_custom_call.1} parent=1 // pred_region
      %71 = dma.done [#allocation9], 16
    $region33: #{tpu_custom_call.1} parent=1 // pred_fallthru
      _
    // Predicated region
    $region34: #{tpu_custom_call.1} parent=1 // pred_check
      _
    $region35: #{tpu_custom_call.1} parent=1 // pred_check_branch
      %73 = sbr.rel (0) target = $region37
    $region36: #{tpu_custom_call.1} parent=1 // pred_region
      %74 = dma.done [#allocation9], 16
    $region37: #{tpu_custom_call.1} parent=1 // pred_fallthru
      _
    // Predicated region
    $region38: #{tpu_custom_call.1} parent=1 // pred_check
      _
    $region39: #{tpu_custom_call.1} parent=1 // pred_check_branch
      %76 = sbr.rel (0) target = $region41
    $region40: #{tpu_custom_call.1} parent=1 // pred_region
      %77 = dma.done [#allocation3], 128
    $region41: #{tpu_custom_call.1} parent=1 // pred_fallthru
      _
    %78 = sfence
    %v79 = vld [vmem:[#allocation11] sm:$0xff]
    %s80 = sld [smem:[#allocation2]]
    %v81 = vstv %s80
    %v82 = vmul.f32 %v79, %v81
    %s83 = sld [smem:[#allocation7]]
    %v84 = vstv %s83
    %v85 = vadd.f32 %v82, %v84
    %vm86 = vcmp.ge.f32.partialorder %v85, 0.0
    %s87 = sld [smem:[#allocation8]]
    %s88 = sld [smem:[#allocation10]]
    %v89 = vstv %s87
    %v90 = vstv %s88
    %v91 = vsel %vm86, %v89, %v90
    %v92 = vmul.f32 %v85, %v91
    %v93 = vadd.f32 %v79, %v92
    %94 = vst [vmem:[#allocation12] sm:$0xff] %v93
    %s95 = sld [smem:[#allocation2 + $0x1]]
    %v96 = vstv %s95
    %v97 = vmul.f32 %v93, %v96
    %s98 = sld [smem:[#allocation7 + $0x1]]
    %v99 = vstv %s98
    %v100 = vadd.f32 %v97, %v99
    %vm101 = vcmp.ge.f32.partialorder %v100, 0.0
    %s102 = sld [smem:[#allocation8 + $0x1]]
    %s103 = sld [smem:[#allocation10 + $0x1]]
    %v104 = vstv %s102
    %v105 = vstv %s103
    %v106 = vsel %vm101, %v104, %v105
    %v107 = vmul.f32 %v100, %v106
    %v108 = vadd.f32 %v93, %v107
    %s109 = scalar_lea.vmem [#allocation12], 8
    %110 = vst [vmem:[%s109] sm:$0xff] %v108
    %s111 = sld [smem:[#allocation2 + $0x2]]
    %v112 = vstv %s111
    %v113 = vmul.f32 %v108, %v112
    %s114 = sld [smem:[#allocation7 + $0x2]]
    %v115 = vstv %s114
    %v116 = vadd.f32 %v113, %v115
    %vm117 = vcmp.ge.f32.partialorder %v116, 0.0
    %s118 = sld [smem:[#allocation8 + $0x2]]
    %s119 = sld [smem:[#allocation10 + $0x2]]
    %v120 = vstv %s118
    %v121 = vstv %s119
    %v122 = vsel %vm117, %v120, %v121
    %v123 = vmul.f32 %v116, %v122
    %v124 = vadd.f32 %v108, %v123
    %s125 = scalar_lea.vmem [#allocation12], 16
    %126 = vst [vmem:[%s125] sm:$0xff] %v124
    %s127 = sld [smem:[#allocation2 + $0x3]]
    %v128 = vstv %s127
    %v129 = vmul.f32 %v124, %v128
    %s130 = sld [smem:[#allocation7 + $0x3]]
    %v131 = vstv %s130
    %v132 = vadd.f32 %v129, %v131
    %vm133 = vcmp.ge.f32.partialorder %v132, 0.0
    %s134 = sld [smem:[#allocation8 + $0x3]]
    %s135 = sld [smem:[#allocation10 + $0x3]]
    %v136 = vstv %s134
    %v137 = vstv %s135
    %v138 = vsel %vm133, %v136, %v137
    %v139 = vmul.f32 %v132, %v138
    %v140 = vadd.f32 %v124, %v139
    %s141 = scalar_lea.vmem [#allocation12], 24
    %142 = vst [vmem:[%s141] sm:$0xff] %v140
    %s143 = sld [smem:[#allocation2 + $0x4]]
    %v144 = vstv %s143
    %v145 = vmul.f32 %v140, %v144
    %s146 = sld [smem:[#allocation7 + $0x4]]
    %v147 = vstv %s146
    %v148 = vadd.f32 %v145, %v147
    %vm149 = vcmp.ge.f32.partialorder %v148, 0.0
    %s150 = sld [smem:[#allocation8 + $0x4]]
    %s151 = sld [smem:[#allocation10 + $0x4]]
    %v152 = vstv %s150
    %v153 = vstv %s151
    %v154 = vsel %vm149, %v152, %v153
    %v155 = vmul.f32 %v148, %v154
    %v156 = vadd.f32 %v140, %v155
    %s157 = scalar_lea.vmem [#allocation12], 32
    %158 = vst [vmem:[%s157] sm:$0xff] %v156
    %s159 = sld [smem:[#allocation2 + $0x5]]
    %v160 = vstv %s159
    %v161 = vmul.f32 %v156, %v160
    %s162 = sld [smem:[#allocation7 + $0x5]]
    %v163 = vstv %s162
    %v164 = vadd.f32 %v161, %v163
    %vm165 = vcmp.ge.f32.partialorder %v164, 0.0
    %s166 = sld [smem:[#allocation8 + $0x5]]
    %s167 = sld [smem:[#allocation10 + $0x5]]
    %v168 = vstv %s166
    %v169 = vstv %s167
    %v170 = vsel %vm165, %v168, %v169
    %v171 = vmul.f32 %v164, %v170
    %v172 = vadd.f32 %v156, %v171
    %s173 = scalar_lea.vmem [#allocation12], 40
    %174 = vst [vmem:[%s173] sm:$0xff] %v172
    %s175 = sld [smem:[#allocation2 + $0x6]]
    %v176 = vstv %s175
    %v177 = vmul.f32 %v172, %v176
    %s178 = sld [smem:[#allocation7 + $0x6]]
    %v179 = vstv %s178
    %v180 = vadd.f32 %v177, %v179
    %vm181 = vcmp.ge.f32.partialorder %v180, 0.0
    %s182 = sld [smem:[#allocation8 + $0x6]]
    %s183 = sld [smem:[#allocation10 + $0x6]]
    %v184 = vstv %s182
    %v185 = vstv %s183
    %v186 = vsel %vm181, %v184, %v185
    %v187 = vmul.f32 %v180, %v186
    %v188 = vadd.f32 %v172, %v187
    %s189 = scalar_lea.vmem [#allocation12], 48
    %190 = vst [vmem:[%s189] sm:$0xff] %v188
    %s191 = sld [smem:[#allocation2 + $0x7]]
    %v192 = vstv %s191
    %v193 = vmul.f32 %v188, %v192
    %s194 = sld [smem:[#allocation7 + $0x7]]
    %v195 = vstv %s194
    %v196 = vadd.f32 %v193, %v195
    %vm197 = vcmp.ge.f32.partialorder %v196, 0.0
    %s198 = sld [smem:[#allocation8 + $0x7]]
    %s199 = sld [smem:[#allocation10 + $0x7]]
    %v200 = vstv %s198
    %v201 = vstv %s199
    %v202 = vsel %vm197, %v200, %v201
    %v203 = vmul.f32 %v196, %v202
    %v204 = vadd.f32 %v188, %v203
    %s205 = scalar_lea.vmem [#allocation12], 56
    %206 = vst [vmem:[%s205] sm:$0xff] %v204
    %s207 = sld [smem:[#allocation2 + $0x8]]
    %v208 = vstv %s207
    %v209 = vmul.f32 %v204, %v208
    %s210 = sld [smem:[#allocation7 + $0x8]]
    %v211 = vstv %s210
    %v212 = vadd.f32 %v209, %v211
    %vm213 = vcmp.ge.f32.partialorder %v212, 0.0
    %s214 = sld [smem:[#allocation8 + $0x8]]
    %s215 = sld [smem:[#allocation10 + $0x8]]
    %v216 = vstv %s214
    %v217 = vstv %s215
    %v218 = vsel %vm213, %v216, %v217
    %v219 = vmul.f32 %v212, %v218
    %v220 = vadd.f32 %v204, %v219
    %s221 = scalar_lea.vmem [#allocation12], 64
    %222 = vst [vmem:[%s221] sm:$0xff] %v220
    %s223 = sld [smem:[#allocation2 + $0x9]]
    %v224 = vstv %s223
    %v225 = vmul.f32 %v220, %v224
    %s226 = sld [smem:[#allocation7 + $0x9]]
    %v227 = vstv %s226
    %v228 = vadd.f32 %v225, %v227
    %vm229 = vcmp.ge.f32.partialorder %v228, 0.0
    %s230 = sld [smem:[#allocation8 + $0x9]]
    %s231 = sld [smem:[#allocation10 + $0x9]]
    %v232 = vstv %s230
    %v233 = vstv %s231
    %v234 = vsel %vm229, %v232, %v233
    %v235 = vmul.f32 %v228, %v234
    %v236 = vadd.f32 %v220, %v235
    %s237 = scalar_lea.vmem [#allocation12], 72
    %238 = vst [vmem:[%s237] sm:$0xff] %v236
    // Predicated region
    $region42: #{tpu_custom_call.1} parent=1 // pred_check
      _
    $region43: #{tpu_custom_call.1} parent=1 // pred_check_branch
      %240 = sbr.rel (0) target = $region45
    $region44: #{tpu_custom_call.1} parent=1 // pred_region
      %s242 = ssub.s32 1280, 1280
      %243 = vsyncadd [#allocation4], %s242
      %s244 = sshll.u32 [#allocation12], 4
      %s245 = int_to_ptr.vmem [resolvable:$true] %s244
      %250 = dma.vmem_to_hbm [thread:$0]  %s245, 1280, %s5, [#allocation4], 128, 128, 8
    $region45: #{tpu_custom_call.1} parent=1 // pred_fallthru
      _
    // Predicated region
    $region46: #{tpu_custom_call.1} parent=1 // pred_check
      _
    $region47: #{tpu_custom_call.1} parent=1 // pred_check_branch
      %252 = sbr.rel (0) target = $region49
    $region48: #{tpu_custom_call.1} parent=1 // pred_region
      %253 = dma.done [#allocation4], 1280
    $region49: #{tpu_custom_call.1} parent=1 // pred_fallthru
      _
    %254 = vsyncpa [#allocation3], 1
    %255 = vsyncpa [#allocation4], 1
    %256 = vsyncpa [#allocation5], 1
    %257 = vsyncpa [#allocation6], 1
    %258 = vsyncpa [#allocation9], 1

</llo_original>
